<compile_context>
chip_gen: v5e
topology: v5e:2x2
jax: 0.10.0
libtpu: 0.0.40
codegen_flags: <defaults>
</compile_context>

<pallas_src>
import jax
import jax.numpy as jnp
from jax.experimental import pallas as pl
from jax.experimental.pallas import tpu as pltpu

LANE = 128
SUBLANE = 8


def _round_up(x, m):
    return ((x + m - 1) // m) * m


def _cdiv(a, b):
    return -(-a // b)


def gcn_agg_kernel(adj_ref, xw_ref, dinv_ref, b_ref, out_ref):
    """One (row-tile, source-tile) step of out = dinv_t * (A @ XW_scaled) + b."""
    k = pl.program_id(1)

    @pl.when(k == 0)
    def _():
        out_ref[...] = jnp.zeros_like(out_ref)

    # bf16 x bf16 on the MXU, f32 accumulation directly into the resident
    # output tile (its block index (i, 0) is constant across k).
    out_ref[...] += jnp.dot(adj_ref[...], xw_ref[...],
                            preferred_element_type=jnp.float32)

    @pl.when(k == pl.num_programs(1) - 1)
    def _():
        # Target-side D^{-1/2} scaling + bias on the otherwise-idle VPU.
        out_ref[...] = out_ref[...] * dinv_ref[...] + b_ref[...]


def gcn_conv_forward(x, edge_index, w, b, *, tm=1024, tk=2048,
                     small_n_threshold=2048):
    """GCNConv forward: D^{-1/2}(A_noself + I)D^{-1/2} @ (x @ w) + b.

    x: [N, Fin] f32, edge_index: [2, E] int, w: [Fin, Fout] f32, b: [1, Fout] f32.
    """
    n = x.shape[0]
    fout = w.shape[1]
    src = edge_index[0]
    dst = edge_index[1]
    not_self = (src != dst)
    diag = jnp.arange(n)

    # Degree at the target, counting the added self-loop (always >= 1).
    deg = jnp.ones((n,), jnp.float32).at[dst].add(not_self.astype(jnp.float32))
    dinv = jax.lax.rsqrt(deg)

    # Small dense matmul once; fold the source-side normalization into it.
    xw = jnp.dot(x, w, preferred_element_type=jnp.float32)          # [N, Fout]
    xw_scaled = xw * dinv[:, None]

    if n <= small_n_threshold:
        # Small-N fast path: kernel fixed overhead + 128-lane padding dwarf the
        # work at these sizes; let XLA fuse the tiny matmuls (all f32, exact).
        a = jnp.zeros((n, n), jnp.float32).at[dst, src].add(
            not_self.astype(jnp.float32))
        a = a.at[diag, diag].add(1.0)
        return dinv[:, None] * jnp.dot(
            a, xw_scaled, preferred_element_type=jnp.float32) + b

    # ----------------------- Pallas path -----------------------------------
    fout_pad = max(LANE, _round_up(fout, LANE))   # lane-dense output stores

    # Even-split tiling: pad N by at most 8 rows / 128 cols per tile instead
    # of rounding N up to a full multiple of tm/tk.
    g_m = max(_cdiv(n, tm), 2)                    # >= 2 row tiles (v7x megacore)
    tm_eff = _round_up(_cdiv(n, g_m), SUBLANE)
    n_rows = g_m * tm_eff
    g_k = _cdiv(n, tk)
    tk_eff = _round_up(_cdiv(n, g_k), LANE)
    n_cols = g_k * tk_eff

    # Streamed operands, built directly in their padded bf16 layout (one pass):
    #   adjacency = raw edge counts + self-loop (exact small integers in bf16).
    adj = jnp.zeros((n_rows, n_cols), jnp.bfloat16)
    adj = adj.at[dst, src].add(not_self.astype(jnp.bfloat16))
    adj = adj.at[diag, diag].add(jnp.ones((n,), jnp.bfloat16))
    #   XW pre-scaled by dinv[source]; the only bf16-quantized operand.
    xw_bf16 = jnp.zeros((n_cols, fout_pad), jnp.bfloat16).at[:n, :fout].set(
        xw_scaled.astype(jnp.bfloat16))
    #   per-target dinv column and padded bias, kept in f32.
    dinv_col = jnp.zeros((n_rows, 1), jnp.float32).at[:n, 0].set(dinv)
    b_pad = jnp.zeros((1, fout_pad), jnp.float32).at[:, :fout].set(b)

    grid = (g_m, g_k)

    out = pl.pallas_call(
        gcn_agg_kernel,
        out_shape=jax.ShapeDtypeStruct((n_rows, fout_pad), jnp.float32),
        grid_spec=pltpu.PrefetchScalarGridSpec(
            num_scalar_prefetch=0,
            grid=grid,
            in_specs=[
                pl.BlockSpec((tm_eff, tk_eff), lambda i, k: (i, k)),    # A counts
                pl.BlockSpec((tk_eff, fout_pad), lambda i, k: (k, 0)),  # XW scaled
                pl.BlockSpec((tm_eff, 1), lambda i, k: (i, 0)),         # dinv[target]
                pl.BlockSpec((1, fout_pad), lambda i, k: (0, 0)),       # bias
            ],
            out_specs=pl.BlockSpec((tm_eff, fout_pad), lambda i, k: (i, 0)),
        ),
        compiler_params=pltpu.CompilerParams(
            dimension_semantics=("parallel", "arbitrary"),
            vmem_limit_bytes=48 * 1024 * 1024,
        ),
        cost_estimate=pl.CostEstimate(
            flops=2 * n_rows * n_cols * fout_pad,
            bytes_accessed=(n_rows * n_cols * 2                 # adjacency (bf16)
                            + g_m * n_cols * fout_pad * 2       # XW re-read per row tile
                            + n_rows * fout_pad * 4             # output (f32)
                            + n_rows * 4 + fout_pad * 4),       # dinv + bias
            transcendentals=0,
        ),
    )(adj, xw_bf16, dinv_col, b_pad)

    return out[:n, :fout]


class FeatureDecoderPallas:
    """latent_dim -> output_dim GCNConv (bias=True). FeatureDecoder.forward never
    applies the activation created in __init__ (and no dropout), so the conv
    output is returned directly."""

    def __init__(self, latent_dim, output_dim, key, small_n_threshold=2048):
        # GCNConv's Linear weight is [out, in]; store transposed [in, out].
        scale = 1.0 / jnp.sqrt(jnp.float32(latent_dim))
        self.w = jax.random.uniform(key, (latent_dim, output_dim),
                                    jnp.float32, -1.0, 1.0) * scale
        self.b = jnp.zeros((1, output_dim), jnp.float32)   # GCNConv bias init = 0
        self.small_n_threshold = small_n_threshold

    def __call__(self, x, edge_index):
        return gcn_conv_forward(x, edge_index, self.w, self.b,
                                small_n_threshold=self.small_n_threshold)


if __name__ == "__main__":
    key = jax.random.PRNGKey(0)
    k_x, k_e, k_p = jax.random.split(key, 3)

    num_nodes = 16
    latent_dim = 8
    output_dim = 4
    num_edges = 32

    x = jax.random.normal(k_x, (num_nodes, latent_dim), jnp.float32)
    edge_index = jax.random.randint(k_e, (2, num_edges), 0, num_nodes,
                                    dtype=jnp.int32)

    # Force the Pallas path at this small demo size (the default threshold would
    # route N=16 to the XLA fast path).
    decoder = FeatureDecoderPallas(latent_dim, output_dim, k_p,
                                   small_n_threshold=0)
    out = jax.block_until_ready(decoder(x, edge_index))
    assert out.shape == (num_nodes, output_dim)

    # ----------------------- references -------------------------------------
    src, dst = edge_index[0], edge_index[1]
    not_self = (src != dst).astype(jnp.float32)
    a = jnp.zeros((num_nodes, num_nodes), jnp.float32).at[dst, src].add(not_self)
    a = a.at[jnp.arange(num_nodes), jnp.arange(num_nodes)].add(1.0)
    deg = a.sum(axis=1)
    dinv = jax.lax.rsqrt(deg)
    xw = jnp.dot(x, decoder.w, preferred_element_type=jnp.float32)

    # Reference 1 (tight): same bf16-quantized XW the kernel consumes (the
    # streamed adjacency counts are exact in bf16), f32 accumulation.
    xw_q = (dinv[:, None] * xw).astype(jnp.bfloat16).astype(jnp.float32)
    ref_q = dinv[:, None] * jnp.dot(a, xw_q,
                                    preferred_element_type=jnp.float32) + decoder.b
    assert jnp.allclose(out, ref_q, atol=2e-3, rtol=2e-3)

    # Reference 2 (loose): full f32 GCNConv pipeline; bf16 streaming of XW only
    # perturbs at the ~0.2-0.4% level.
    m = dinv[:, None] * a * dinv[None, :]
    ref_f32 = jnp.dot(m, xw, preferred_element_type=jnp.float32) + decoder.b
    assert jnp.allclose(out, ref_f32, atol=2e-2, rtol=2e-2)

    # Also exercise the small-N XLA fast path (the default routing for N=16).
    out_fast = jax.block_until_ready(
        gcn_conv_forward(x, edge_index, decoder.w, decoder.b))
    assert jnp.allclose(out_fast, ref_f32, atol=1e-4, rtol=1e-4)

    print("KERNEL_OK")
</pallas_src>

<mosaic_0001>
module attributes {stable_mosaic.version = 11 : i64} {
  func.func @gcn_agg_kernel(%arg0: i32, %arg1: i32, %arg2: memref<8x128xbf16, #tpu.memory_space<vmem>>, %arg3: memref<128x128xbf16, #tpu.memory_space<vmem>>, %arg4: memref<8x1xf32, #tpu.memory_space<vmem>>, %arg5: memref<1x128xf32, #tpu.memory_space<vmem>>, %arg6: memref<8x128xf32, #tpu.memory_space<vmem>>) attributes {dimension_semantics = [#tpu.dimension_semantics<parallel>, #tpu.dimension_semantics<arbitrary>], iteration_bounds = array<i64: 2, 1>, scalar_prefetch = 0 : i64, scratch_operands = 0 : i64, tpu.core_type = #tpu.core_type<tc>, window_params = [{transform_indices = @transform_0, window_bounds = array<i64: 8, 128>}, {transform_indices = @transform_1, window_bounds = array<i64: 128, 128>}, {transform_indices = @transform_2, window_bounds = array<i64: 8, 1>}, {pipeline_mode = #tpu.pipeline_mode<synchronous>, transform_indices = @transform_3, window_bounds = array<i64: 1, 128>}, {transform_indices = @transform_4, window_bounds = array<i64: 8, 128>}]} {
    %c0_i32 = arith.constant 0 : i32
    %0 = arith.cmpi eq, %arg1, %c0_i32 : i32
    %1 = arith.extui %0 : i1 to i32
    %c0_i32_0 = arith.constant 0 : i32
    %2 = arith.cmpi ne, %1, %c0_i32_0 : i32
    scf.if %2 {
      %cst_10 = arith.constant 0.000000e+00 : f32
      %12 = vector.broadcast %cst_10 : f32 to vector<8x128xf32>
      %c0_11 = arith.constant 0 : index
      %c0_12 = arith.constant 0 : index
      %13 = vector.load %arg6[%c0_11, %c0_12] : memref<8x128xf32, #tpu.memory_space<vmem>>, vector<8x128xf32>
      tpu.vector_store %arg6[%c0_11, %c0_12], %12 {strides = array<i32>} : memref<8x128xf32, #tpu.memory_space<vmem>>, vector<8x128xf32>,
    } else {
    }
    %c0 = arith.constant 0 : index
    %c0_1 = arith.constant 0 : index
    %3 = vector.load %arg6[%c0, %c0_1] : memref<8x128xf32, #tpu.memory_space<vmem>>, vector<8x128xf32>
    %c0_2 = arith.constant 0 : index
    %c0_3 = arith.constant 0 : index
    %4 = vector.load %arg2[%c0_2, %c0_3] : memref<8x128xbf16, #tpu.memory_space<vmem>>, vector<8x128xbf16>
    %c0_4 = arith.constant 0 : index
    %c0_5 = arith.constant 0 : index
    %5 = vector.load %arg3[%c0_4, %c0_5] : memref<128x128xbf16, #tpu.memory_space<vmem>>, vector<128x128xbf16>
    %cst = arith.constant dense<0.000000e+00> : vector<8x128xf32>
    %6 = tpu.matmul %4, %5, %cst {dimension_numbers = #tpu.dot_dimension_numbers<[1], [0], [0], [1], [0, 0, 1, 1], [], []>} : vector<8x128xbf16>, vector<128x128xbf16>, vector<8x128xf32> -> vector<8x128xf32>
    %7 = arith.addf %3, %6 : vector<8x128xf32>
    %c0_6 = arith.constant 0 : index
    %c0_7 = arith.constant 0 : index
    %8 = vector.load %arg6[%c0_6, %c0_7] : memref<8x128xf32, #tpu.memory_space<vmem>>, vector<8x128xf32>
    tpu.vector_store %arg6[%c0_6, %c0_7], %7 {strides = array<i32>} : memref<8x128xf32, #tpu.memory_space<vmem>>, vector<8x128xf32>,
    %c0_i32_8 = arith.constant 0 : i32
    %9 = arith.cmpi eq, %arg1, %c0_i32_8 : i32
    %10 = arith.extui %9 : i1 to i32
    %c0_i32_9 = arith.constant 0 : i32
    %11 = arith.cmpi ne, %10, %c0_i32_9 : i32
    scf.if %11 {
      %c0_10 = arith.constant 0 : index
      %c0_11 = arith.constant 0 : index
      %12 = vector.load %arg6[%c0_10, %c0_11] : memref<8x128xf32, #tpu.memory_space<vmem>>, vector<8x128xf32>
      %c0_12 = arith.constant 0 : index
      %c0_13 = arith.constant 0 : index
      %13 = vector.load %arg4[%c0_12, %c0_13] : memref<8x1xf32, #tpu.memory_space<vmem>>, vector<8x1xf32>
      %14 = vector.broadcast %13 : vector<8x1xf32> to vector<8x128xf32>
      %15 = arith.mulf %12, %14 : vector<8x128xf32>
      %c0_14 = arith.constant 0 : index
      %c0_15 = arith.constant 0 : index
      %16 = vector.load %arg5[%c0_14, %c0_15] : memref<1x128xf32, #tpu.memory_space<vmem>>, vector<1x128xf32>
      %17 = vector.broadcast %16 : vector<1x128xf32> to vector<8x128xf32>
      %18 = arith.addf %15, %17 : vector<8x128xf32>
      %c0_16 = arith.constant 0 : index
      %c0_17 = arith.constant 0 : index
      %19 = vector.load %arg6[%c0_16, %c0_17] : memref<8x128xf32, #tpu.memory_space<vmem>>, vector<8x128xf32>
      tpu.vector_store %arg6[%c0_16, %c0_17], %18 {strides = array<i32>} : memref<8x128xf32, #tpu.memory_space<vmem>>, vector<8x128xf32>,
    } else {
    }
    return
  }
  func.func @transform_0(%arg0: i32, %arg1: i32) -> (i32, i32) {
    %c0_i32 = arith.constant 0 : i32
    return %arg0, %arg1 : i32, i32
  }
  func.func @transform_1(%arg0: i32, %arg1: i32) -> (i32, i32) {
    %c0_i32 = arith.constant 0 : i32
    %c0_i32_0 = arith.constant 0 : i32
    return %arg1, %c0_i32 : i32, i32
  }
  func.func @transform_2(%arg0: i32, %arg1: i32) -> (i32, i32) {
    %c0_i32 = arith.constant 0 : i32
    %c0_i32_0 = arith.constant 0 : i32
    return %arg0, %c0_i32 : i32, i32
  }
  func.func @transform_3(%arg0: i32, %arg1: i32) -> (i32, i32) {
    %c0_i32 = arith.constant 0 : i32
    %c0_i32_0 = arith.constant 0 : i32
    %c0_i32_1 = arith.constant 0 : i32
    return %c0_i32, %c0_i32_0 : i32, i32
  }
  func.func @transform_4(%arg0: i32, %arg1: i32) -> (i32, i32) {
    %c0_i32 = arith.constant 0 : i32
    %c0_i32_0 = arith.constant 0 : i32
    return %arg0, %c0_i32 : i32, i32
  }
}

</mosaic_0001>

<llo_original>
// kernel: tpu_custom_call.1
$region0: #{tpu_custom_call.1}
  #allocation0 [shape = 'u32[]', space=smem, size = 0x4, offset = 0x4, fixed_abs, tag = 'smem constant byte address 0x4 - core index']
  #allocation1 [shape = 'u32[72,128]{1,0:T(1,128)}', space=vmem, size = 0x9000, scoped, tag = 'internal scratch']
  %s0 = inlined_call_operand.vmem [shape: bf16[16,128], index: 0, kind: input, shape index: {}]
  %s1 = inlined_call_operand.hbm [shape: bf16[128,128], index: 1, kind: input, shape index: {}]
  %s2 = inlined_call_operand.vmem [shape: f32[16,1], index: 2, kind: input, shape index: {}]
  %s3 = inlined_call_operand.vmem [shape: f32[1,128], index: 3, kind: input, shape index: {}]
  %s4 = inlined_call_operand.hbm [shape: f32[16,128], index: 4, kind: output, shape index: {}]
  %s5 = sld [smem:[#allocation0]]
  $region61: #{tpu_custom_call.1} parent=0
    _
  %s7 = ssub.s32 1, %s5
  %s8 = scalar_select 0, %s7, %s5
  $region1: #{tpu_custom_call.1} parent=0
    #allocation2 [shape = 'u8[32768]{0}', space=vmem, size = 0x8000, scoped, tag = 'input window, operand 1, single buffered']
    #allocation3 [shape = 's32[2]{0}', space=sflag, size = 0x8, scoped, tag = 'scoped memory for tpu_custom_call.1']
    #allocation4 [shape = 's32[2]{0}', space=sflag, size = 0x8, scoped, tag = 'scoped memory for tpu_custom_call.1']
    #allocation5 [shape = 'u8[8192]{0}', space=vmem, size = 0x2000, scoped, tag = 'output window, operand 0']
    %9 = vsyncpa [#allocation3], 0
    %10 = vsyncpa [#allocation4], 0
    %s11 = scalar_lea.sflag [#allocation4], 1
    %12 = vsyncpa %s11, 0
    loop: start=0, step=1, limit=4
    $region2: #{tpu_custom_call.1} parent=1 // loop_pre_header
      _
    $region3: #{tpu_custom_call.1} parent=1 // loop_header
      %s14 = sphi 0, %s18
      %p15 = scmp.ge.s32.totalorder %s14, 4
      %s21 = sphi 0, %s33
      %s22 = sphi 0, %s29
      %s23 = sphi 0, %s21
      %s24 = sphi 0, %s22
      %s25 = sphi 0, %s23
      %s26 = sphi 0, %s24
      %s38 = sphi 0, %s40
      %s41 = sphi 0, %s38
      %s42 = sphi 0, %s41
      %s58 = sphi 0, %s42
      %s64 = sphi 0, %s66
      %s67 = sphi 0, %s64
      %s68 = sphi 0, %s67
      %s84 = sphi 0, %s68
      %s90 = sphi 0, %s92
      %s93 = sphi 0, %s90
      %s94 = sphi 0, %s93
      %s110 = sphi 0, %s94
      %s114 = sphi 0, %s114
      %s116 = sphi 0, %s114
      %s117 = sphi 0, %s116
      %s131 = sphi 0, %s117
      %s137 = sphi 0, %s139
      %s140 = sphi 0, %s137
      %s141 = sphi 0, %s140
      %s157 = sphi 0, %s141
    $region4: #{tpu_custom_call.1} parent=1 // loop_header_branch
      %17 = sbr.rel (%p15) target = $region8
    $region5: #{tpu_custom_call.1} parent=1 // loop_body
      %s19 = ssub.s32 %s14, 1
      %s20 = ssub.s32 %s14, 2
      %s27 = sadd.s32 1, %s22
      %p28 = scmp.ge.s32.totalorder %s27, 1
      %s29 = scalar_select %p28, 0, %s27
      %s30 = sadd.s32 1, %s21
      %s31 = scalar_select %p28, %s30, %s21
      %p32 = scmp.ge.s32.totalorder %s31, 2
      %s33 = scalar_select %p32, 0, %s31
      %s34 = ssub.s32 %s21, %s33
      %s35 = ssub.s32 %s22, %s29
      %s36 = sor.u32 %s34, %s35
      %p37 = scmp.eq.s32.totalorder %s36, 0
      %s39 = sadd.s32 %s38, 1
      %s40 = scalar_select %p37, %s38, %s39
      %p43 = pneg %p37
      %p44 = scmp.eq.s32.totalorder %s14, 1
      %p45 = por %p43, %p44
      %p46 = scmp.ne.s32.totalorder %s38, %s41
      %p47 = scmp.eq.s32.totalorder %s14, 0
      %p48 = por %p46, %p47
      %p49 = scmp.ne.s32.totalorder %s38, %s41
      %p50 = scmp.eq.s32.totalorder %s19, 1
      %p51 = por %p49, %p50
      %p52 = scmp.ne.s32.totalorder %s41, %s42
      %p53 = scmp.eq.s32.totalorder %s19, 0
      %p54 = por %p52, %p53
      %p55 = scmp.ne.s32.totalorder %s41, %s42
      %p56 = scmp.eq.s32.totalorder %s20, 1
      %p57 = por %p55, %p56
      %p59 = scmp.ne.s32.totalorder %s42, %s58
      %p60 = scmp.eq.s32.totalorder %s20, 0
      %p61 = por %p59, %p60
      %s62 = ssub.s32 %s22, %s29
      %p63 = scmp.eq.s32.totalorder %s62, 0
      %s65 = sadd.s32 %s64, 1
      %s66 = scalar_select %p63, %s64, %s65
      %p69 = pneg %p63
      %p70 = scmp.eq.s32.totalorder %s14, 1
      %p71 = por %p69, %p70
      %p72 = scmp.ne.s32.totalorder %s64, %s67
      %p73 = scmp.eq.s32.totalorder %s14, 0
      %p74 = por %p72, %p73
      %p75 = scmp.ne.s32.totalorder %s64, %s67
      %p76 = scmp.eq.s32.totalorder %s19, 1
      %p77 = por %p75, %p76
      %p78 = scmp.ne.s32.totalorder %s67, %s68
      %p79 = scmp.eq.s32.totalorder %s19, 0
      %p80 = por %p78, %p79
      %p81 = scmp.ne.s32.totalorder %s67, %s68
      %p82 = scmp.eq.s32.totalorder %s20, 1
      %p83 = por %p81, %p82
      %p85 = scmp.ne.s32.totalorder %s68, %s84
      %p86 = scmp.eq.s32.totalorder %s20, 0
      %p87 = por %p85, %p86
      %s88 = ssub.s32 %s21, %s33
      %p89 = scmp.eq.s32.totalorder %s88, 0
      %s91 = sadd.s32 %s90, 1
      %s92 = scalar_select %p89, %s90, %s91
      %p95 = pneg %p89
      %p96 = scmp.eq.s32.totalorder %s14, 1
      %p97 = por %p95, %p96
      %p98 = scmp.ne.s32.totalorder %s90, %s93
      %p99 = scmp.eq.s32.totalorder %s14, 0
      %p100 = por %p98, %p99
      %p101 = scmp.ne.s32.totalorder %s90, %s93
      %p102 = scmp.eq.s32.totalorder %s19, 1
      %p103 = por %p101, %p102
      %p104 = scmp.ne.s32.totalorder %s93, %s94
      %p105 = scmp.eq.s32.totalorder %s19, 0
      %p106 = por %p104, %p105
      %p107 = scmp.ne.s32.totalorder %s93, %s94
      %p108 = scmp.eq.s32.totalorder %s20, 1
      %p109 = por %p107, %p108
      %p111 = scmp.ne.s32.totalorder %s94, %s110
      %p112 = scmp.eq.s32.totalorder %s20, 0
      %p113 = por %p111, %p112
      %s115 = sadd.s32 %s114, 1
      %p118 = scmp.eq.s32.totalorder %s14, 1
      %p119 = scmp.ne.s32.totalorder %s114, %s116
      %p120 = scmp.eq.s32.totalorder %s14, 0
      %p121 = por %p119, %p120
      %p122 = scmp.ne.s32.totalorder %s114, %s116
      %p123 = scmp.eq.s32.totalorder %s19, 1
      %p124 = por %p122, %p123
      %p125 = scmp.ne.s32.totalorder %s116, %s117
      %p126 = scmp.eq.s32.totalorder %s19, 0
      %p127 = por %p125, %p126
      %p128 = scmp.ne.s32.totalorder %s116, %s117
      %p129 = scmp.eq.s32.totalorder %s20, 1
      %p130 = por %p128, %p129
      %p132 = scmp.ne.s32.totalorder %s117, %s131
      %p133 = scmp.eq.s32.totalorder %s20, 0
      %p134 = por %p132, %p133
      %s135 = ssub.s32 %s21, %s33
      %p136 = scmp.eq.s32.totalorder %s135, 0
      %s138 = sadd.s32 %s137, 1
      %s139 = scalar_select %p136, %s137, %s138
      %p142 = pneg %p136
      %p143 = scmp.eq.s32.totalorder %s14, 1
      %p144 = por %p142, %p143
      %p145 = scmp.ne.s32.totalorder %s137, %s140
      %p146 = scmp.eq.s32.totalorder %s14, 0
      %p147 = por %p145, %p146
      %p148 = scmp.ne.s32.totalorder %s137, %s140
      %p149 = scmp.eq.s32.totalorder %s19, 1
      %p150 = por %p148, %p149
      %p151 = scmp.ne.s32.totalorder %s140, %s141
      %p152 = scmp.eq.s32.totalorder %s19, 0
      %p153 = por %p151, %p152
      %p154 = scmp.ne.s32.totalorder %s140, %s141
      %p155 = scmp.eq.s32.totalorder %s20, 1
      %p156 = por %p154, %p155
      %p158 = scmp.ne.s32.totalorder %s141, %s157
      %p159 = scmp.eq.s32.totalorder %s20, 0
      %p160 = por %p158, %p159
      %p161 = scmp.le.s32.totalorder 1, %s14
      %p162 = scmp.lt.s32.totalorder %s14, 3
      %p163 = pnand %p161, %p162
      %p164 = pneg %p163
      // Predicated region
      $region9: #{tpu_custom_call.1} parent=5 // pred_check
        _
      $region10: #{tpu_custom_call.1} parent=5 // pred_check_branch
        %166 = sbr.rel (%p163) target = $region12
      $region11: #{tpu_custom_call.1} parent=5 // pred_region
        %s167 = ssub.s32 %s14, 1
        // Predicated region
        $region13: #{tpu_custom_call.1} parent=11 // pred_check
          %p168 = pneg %p80
        $region14: #{tpu_custom_call.1} parent=11 // pred_check_branch
          %170 = sbr.rel (%p168) target = $region16
        $region15: #{tpu_custom_call.1} parent=11 // pred_region
          %s171 = smul.u32 16, %s24
          %173 = vsyncadd [#allocation3], 0
          %s174 = smul.addr %s171, 4
          %s175 = scalar_lea.hbm %s1, %s174
          %s176 = sshll.u32 %s175, 4
          %s177 = int_to_ptr.hbm [resolvable:$true] %s176
          %s178 = sshll.u32 [#allocation2], 4
          %s179 = int_to_ptr.vmem [resolvable:$true] %s178
          %184 = dma.hbm_to_vmem [thread:$0]  %s177, 1024, %s179, [#allocation3], 64, 64, 4
        $region16: #{tpu_custom_call.1} parent=11 // pred_fallthru
          _
        // Predicated region
        $region17: #{tpu_custom_call.1} parent=11 // pred_check
          %p185 = pneg %p127
        $region18: #{tpu_custom_call.1} parent=11 // pred_check_branch
          %187 = sbr.rel (%p185) target = $region20
        $region19: #{tpu_custom_call.1} parent=11 // pred_region
          _
        $region20: #{tpu_custom_call.1} parent=11 // pred_fallthru
          _
      $region12: #{tpu_custom_call.1} parent=5 // pred_fallthru
        _
      %p188 = scmp.lt.s32.totalorder %s14, 2
      // Predicated region
      $region21: #{tpu_custom_call.1} parent=5 // pred_check
        %p189 = pneg %p188
      $region22: #{tpu_custom_call.1} parent=5 // pred_check_branch
        %191 = sbr.rel (%p189) target = $region24
      $region23: #{tpu_custom_call.1} parent=5 // pred_region
        // Predicated region
        $region25: #{tpu_custom_call.1} parent=23 // pred_check
          %p192 = pneg %p48
        $region26: #{tpu_custom_call.1} parent=23 // pred_check_branch
          %194 = sbr.rel (%p192) target = $region28
        $region27: #{tpu_custom_call.1} parent=23 // pred_region
          %p195 = scmp.lt.s32.totalorder %s21, 1
          %s196 = scalar_select %p195, %s21, 1
          %p197 = scmp.lt.s32.totalorder %s22, 0
          %s198 = scalar_select %p197, %s22, 0
          %s199 = sadd.s32 %s198, %s196
          %s200 = smul.addr %s199, 4
          %s201 = scalar_lea.vmem %s0, %s200
        $region28: #{tpu_custom_call.1} parent=23 // pred_fallthru
          _
        // Predicated region
        $region29: #{tpu_custom_call.1} parent=23 // pred_check
          %p202 = pneg %p100
        $region30: #{tpu_custom_call.1} parent=23 // pred_check_branch
          %204 = sbr.rel (%p202) target = $region32
        $region31: #{tpu_custom_call.1} parent=23 // pred_region
          %p205 = scmp.lt.s32.totalorder %s21, 1
          %s206 = scalar_select %p205, %s21, 1
          %s207 = smul.addr %s206, 8
          %s208 = scalar_lea.vmem %s2, %s207
        $region32: #{tpu_custom_call.1} parent=23 // pred_fallthru
          _
      $region24: #{tpu_custom_call.1} parent=5 // pred_fallthru
        _
      %p209 = scmp.le.s32.totalorder 1, %s14
      %p210 = scmp.lt.s32.totalorder %s14, 3
      %p211 = pnand %p209, %p210
      %p212 = pneg %p211
      // Predicated region
      $region33: #{tpu_custom_call.1} parent=5 // pred_check
        _
      $region34: #{tpu_custom_call.1} parent=5 // pred_check_branch
        %214 = sbr.rel (%p211) target = $region36
      $region35: #{tpu_custom_call.1} parent=5 // pred_region
        %s215 = ssub.s32 %s14, 1
        // Predicated region
        $region37: #{tpu_custom_call.1} parent=35 // pred_check
          %p216 = pneg %p80
        $region38: #{tpu_custom_call.1} parent=35 // pred_check_branch
          %218 = sbr.rel (%p216) target = $region40
        $region39: #{tpu_custom_call.1} parent=35 // pred_region
          %220 = dma.done [#allocation3], 1024
        $region40: #{tpu_custom_call.1} parent=35 // pred_fallthru
          _
        %p221 = scmp.lt.s32.totalorder %s23, 1
        %s222 = scalar_select %p221, %s23, 1
        %p223 = scmp.lt.s32.totalorder %s24, 0
        %s224 = scalar_select %p223, %s24, 0
        %s225 = sadd.s32 %s224, %s222
        %s226 = smul.addr %s225, 4
        %s227 = scalar_lea.vmem %s0, %s226
        %p228 = pneg %p54
        %p229 = pneg %p51
        %p230 = pneg %p80
        %p231 = pneg %p77
        %p232 = scmp.lt.s32.totalorder %s23, 1
        %s233 = scalar_select %p232, %s23, 1
        %s234 = smul.addr %s233, 8
        %s235 = scalar_lea.vmem %s2, %s234
        %p236 = pneg %p106
        %p237 = pneg %p103
        %p238 = pneg %p127
        %p239 = pneg %p124
        %p240 = pneg %p153
        %p241 = pneg %p150
        %s242 = sand.u32 %s140, 1
        %s243 = scalar_lea.sflag [#allocation4], %s242
        %s244 = sand.u32 %s140, 1
        %s245 = smul.addr %s244, 8
        %s246 = scalar_lea.vmem [#allocation5], %s245
        %p247 = scmp.lt.s32.totalorder %s23, 1
        %s248 = scalar_select %p247, %s23, 1
        %p249 = scmp.lt.s32.totalorder %s24, 0
        %s250 = scalar_select %p249, %s24, 0
        %s251 = sadd.s32 %s250, %s248
        %s252 = smul.addr %s251, 4
        %s253 = scalar_lea.vmem %s0, %s252
        %s254 = smul.u32 16, %s24
        %p255 = scmp.lt.s32.totalorder %s23, 1
        %s256 = scalar_select %p255, %s23, 1
        %s257 = smul.addr %s256, 8
        %s258 = scalar_lea.vmem %s2, %s257
        %p259 = scmp.eq.s32.totalorder %s24, 0
        // Predicated region
        $region41: #{tpu_custom_call.1} parent=35 // pred_check
          %p260 = pneg %p259
        $region42: #{tpu_custom_call.1} parent=35 // pred_check_branch
          %262 = sbr.rel (%p260) target = $region44
        $region43: #{tpu_custom_call.1} parent=35 // pred_region
          %263 = vst [vmem:[%s246] sm:$0xff] 0.0
        $region44: #{tpu_custom_call.1} parent=35 // pred_fallthru
          _
        %v264 = vld [vmem:[%s246] sm:$0xff]
        %v265 = vld [vmem:[%s253] sm:$0xf]
        %v266 = vld [vmem:[#allocation2] sm:$0xf]
        %v267 = vld [vmem:[#allocation2 + $0x4] sm:$0xf]
        %v268 = vld [vmem:[#allocation2 + $0x8] sm:$0xf]
        %v269 = vld [vmem:[#allocation2 + $0xc] sm:$0xf]
        %v270 = vld [vmem:[#allocation2 + $0x10] sm:$0xf]
        %v271 = vld [vmem:[#allocation2 + $0x14] sm:$0xf]
        %v272 = vld [vmem:[#allocation2 + $0x18] sm:$0xf]
        %v273 = vld [vmem:[#allocation2 + $0x1c] sm:$0xf]
        %v274 = vld [vmem:[#allocation2 + $0x20] sm:$0xf]
        %v275 = vld [vmem:[#allocation2 + $0x24] sm:$0xf]
        %v276 = vld [vmem:[#allocation2 + $0x28] sm:$0xf]
        %v277 = vld [vmem:[#allocation2 + $0x2c] sm:$0xf]
        %v278 = vld [vmem:[#allocation2 + $0x30] sm:$0xf]
        %v279 = vld [vmem:[#allocation2 + $0x34] sm:$0xf]
        %v280 = vld [vmem:[#allocation2 + $0x38] sm:$0xf]
        %v281 = vld [vmem:[#allocation2 + $0x3c] sm:$0xf]
        %v298 = vunpack.c.l.b16 %v266
        %v299 = vunpack.c.l.b16 %v267
        %v300 = vunpack.c.l.b16 %v268
        %v301 = vunpack.c.l.b16 %v269
        %v302 = vunpack.c.l.b16 %v270
        %v303 = vunpack.c.l.b16 %v271
        %v304 = vunpack.c.l.b16 %v272
        %v305 = vunpack.c.l.b16 %v273
        %v306 = vunpack.c.l.b16 %v274
        %v307 = vunpack.c.l.b16 %v275
        %v308 = vunpack.c.l.b16 %v276
        %v309 = vunpack.c.l.b16 %v277
        %v310 = vunpack.c.l.b16 %v278
        %v311 = vunpack.c.l.b16 %v279
        %v312 = vunpack.c.l.b16 %v280
        %v313 = vunpack.c.l.b16 %v281
        %v314 = vpack.c.b16 %v299, %v298
        %v315 = vpack.c.b16 %v301, %v300
        %v316 = vpack.c.b16 %v303, %v302
        %v317 = vpack.c.b16 %v305, %v304
        %v318 = vpack.c.b16 %v307, %v306
        %v319 = vpack.c.b16 %v309, %v308
        %v320 = vpack.c.b16 %v311, %v310
        %v321 = vpack.c.b16 %v313, %v312
        %330 = vmatpush.bf16.msra.mxu0 %v321
        %331 = vmatpush.bf16.msra.mxu0 %v320
        %332 = vmatpush.bf16.msra.mxu0 %v319
        %333 = vmatpush.bf16.msra.mxu0 %v318
        %334 = vmatpush.bf16.msra.mxu0 %v317
        %335 = vmatpush.bf16.msra.mxu0 %v316
        %336 = vmatpush.bf16.msra.mxu0 %v315
        %337 = vmatpush.bf16.msra.mxu0 %v314
        %338 = vmatmul.bf16.gmra.mxu0 %v265
        %v339 = vpop.f32.mrf.mxu0
        %v340 = vadd.f32 0.0, %v339
        %v341 = vpop.f32.mrf.mxu0
        %342 = vdwg.mxu0
        %v343 = vadd.f32 %v264, %v340
        %344 = vst [vmem:[%s246] sm:$0xff] %v343
        // Predicated region
        $region45: #{tpu_custom_call.1} parent=35 // pred_check
          %p345 = pneg %p259
        $region46: #{tpu_custom_call.1} parent=35 // pred_check_branch
          %347 = sbr.rel (%p345) target = $region48
        $region47: #{tpu_custom_call.1} parent=35 // pred_region
          %v348 = vld [vmem:[%s246] sm:$0xff]
          %v349 = vld [vmem:[%s258] sm:$0xff]
          %351 = vset.pattern.permute.xlu0 0
          %352 = vperm.xlu0 %351, %v349
          %v353 = vpop.permute.xlu0 %352
          %v355 = vmul.f32 %v348, %v353
          %v356 = vld [vmem:[%s3] sm:$0x1]
          %v358 = vperm.slane %v356, 0
          %v360 = vadd.f32 %v355, %v358
          %361 = vst [vmem:[%s246] sm:$0xff] %v360
        $region48: #{tpu_custom_call.1} parent=35 // pred_fallthru
          _
        %s362 = sand.u32 %s140, 1
        %s363 = scalar_lea.sflag [#allocation4], %s362
        %s364 = sand.u32 %s140, 1
        %s365 = smul.addr %s364, 8
        %s366 = scalar_lea.vmem [#allocation5], %s365
        // Predicated region
        $region49: #{tpu_custom_call.1} parent=35 // pred_check
          %p367 = pneg %p150
        $region50: #{tpu_custom_call.1} parent=35 // pred_check_branch
          %369 = sbr.rel (%p367) target = $region52
        $region51: #{tpu_custom_call.1} parent=35 // pred_region
          %371 = vsyncadd %s363, 0
          %s372 = smul.addr %s23, 8
          %s373 = scalar_lea.hbm %s4, %s372
          %s375 = sshll.u32 %s366, 4
          %s376 = int_to_ptr.vmem [resolvable:$true] %s375
          %s377 = sshll.u32 %s373, 4
          %s378 = int_to_ptr.hbm [resolvable:$true] %s377
          %380 = dma.vmem_to_hbm [thread:$0]  %s376, 128, %s378, %s363
        $region52: #{tpu_custom_call.1} parent=35 // pred_fallthru
          _
      $region36: #{tpu_custom_call.1} parent=5 // pred_fallthru
        _
      %p381 = scmp.le.s32.totalorder 2, %s14
      // Predicated region
      $region53: #{tpu_custom_call.1} parent=5 // pred_check
        %p382 = pneg %p381
      $region54: #{tpu_custom_call.1} parent=5 // pred_check_branch
        %384 = sbr.rel (%p382) target = $region56
      $region55: #{tpu_custom_call.1} parent=5 // pred_region
        %s385 = ssub.s32 %s14, 2
        // Predicated region
        $region57: #{tpu_custom_call.1} parent=55 // pred_check
          %p386 = pneg %p156
        $region58: #{tpu_custom_call.1} parent=55 // pred_check_branch
          %388 = sbr.rel (%p386) target = $region60
        $region59: #{tpu_custom_call.1} parent=55 // pred_region
          %s389 = sand.u32 %s141, 1
          %s390 = scalar_lea.sflag [#allocation4], %s389
          %s391 = sand.u32 %s141, 1
          %s392 = smul.addr %s391, 8
          %s393 = scalar_lea.vmem [#allocation5], %s392
          %395 = dma.done %s390, 128
        $region60: #{tpu_custom_call.1} parent=55 // pred_fallthru
          _
      $region56: #{tpu_custom_call.1} parent=5 // pred_fallthru
        _
    $region6: #{tpu_custom_call.1} parent=1 // loop_footer
      %s18 = sadd.s32 1, %s14
    $region7: #{tpu_custom_call.1} parent=1 // loop_footer_branch
      %13 = sbr.rel target = $region3
    $region8: #{tpu_custom_call.1} parent=1 // loop_exit
      _
    %396 = vsyncpa [#allocation3], 1
    %s397 = scalar_lea.sflag [#allocation3], 1
    %398 = vsyncpa %s397, 1
    %399 = vsyncpa [#allocation4], 1
    %s400 = scalar_lea.sflag [#allocation4], 1
    %401 = vsyncpa %s400, 1

</llo_original>
